<compile_context>
chip_gen: v6e
topology: v6e:2x2x1
jax: 0.10.0
libtpu: 0.0.40
codegen_flags: <defaults>
</compile_context>

<pallas_src>
import numpy as np
from functools import partial

import jax
import jax.numpy as jnp
from jax.experimental import pallas as pl
from jax.experimental.pallas import tpu as pltpu

_LANE = 128  # lane width used for the (padded) feature / logit outputs


# ---------------------------------------------------------------------------
# pltpu.roll sign-convention probe (cached).  The stride-1 depthwise taps need
# "tap[r] = x[r + delta]"; this one-off tiny kernel pins down the device's roll
# direction so the fused kernel is correct regardless of convention.
# ---------------------------------------------------------------------------
_ROLL_SIGN = None


def _roll_probe_kernel(x_ref, o_ref):
    o_ref[...] = pltpu.roll(x_ref[...], shift=1, axis=0)


def _get_roll_sign():
    global _ROLL_SIGN
    if _ROLL_SIGN is None:
        x = jnp.arange(8 * 128, dtype=jnp.float32).reshape(8, 128)
        y = pl.pallas_call(
            _roll_probe_kernel,
            out_shape=jax.ShapeDtypeStruct((8, 128), jnp.float32),
        )(x)
        if bool(jnp.array_equal(y, jnp.roll(x, 1, axis=0))):
            _ROLL_SIGN = -1          # pltpu.roll matches jnp.roll convention
        elif bool(jnp.array_equal(y, jnp.roll(x, -1, axis=0))):
            _ROLL_SIGN = 1           # opposite convention
        else:
            _ROLL_SIGN = 0           # unknown -> fall back to jnp.roll in-kernel
    return _ROLL_SIGN


def _default_num_steps(n):
    """2 parallel grid steps on dual-TC chips (v7x); otherwise fold the whole
    batch into one step so every matmul gets the largest possible M."""
    try:
        kind = jax.devices()[0].device_kind.lower()
    except Exception:
        kind = ""
    if (("v7" in kind) or ("7x" in kind)) and n >= 2 and n % 2 == 0:
        return 2
    return 1


# ---------------------------------------------------------------------------
# Hoisted constants (built with numpy at trace time)
# ---------------------------------------------------------------------------
def _dw_masks(hh, ww, b_tile):
    """(9, b_tile*hh*ww, 1) f32 validity masks for a stride-1 3x3 depthwise conv
    on a batch-folded (rows = image-major) map."""
    r = hh * ww
    m = np.zeros((9, r, 1), np.float32)
    for dy in range(3):
        for dx in range(3):
            t = dy * 3 + dx
            for o in range(r):
                oy, ox = o // ww, o % ww
                iy, ix = oy + dy - 1, ox + dx - 1
                if 0 <= iy < hh and 0 <= ix < ww:
                    m[t, o, 0] = 1.0
    return np.tile(m, (1, b_tile, 1))


def _stride2_dw_gather(h2, w2, b_tile):
    """Stacked (tap-major, image-block-diagonal) 0/1 gather matrix for the
    stride-2 3x3 depthwise conv: (9*b_tile*h4*w4, b_tile*h2*w2)."""
    h4, w4 = h2 // 2, w2 // 2
    r_in_img, r_out_img = h2 * w2, h4 * w4
    r_in, r_out = b_tile * r_in_img, b_tile * r_out_img
    g = np.zeros((9 * r_out, r_in), np.float32)
    for dy in range(3):
        for dx in range(3):
            t = dy * 3 + dx
            for b in range(b_tile):
                for o in range(r_out_img):
                    oy, ox = o // w4, o % w4
                    iy, ix = 2 * oy + dy - 1, 2 * ox + dx - 1
                    if 0 <= iy < h2 and 0 <= ix < w2:
                        g[t * r_out + b * r_out_img + o,
                          b * r_in_img + iy * w2 + ix] = 1.0
    return g


# ---------------------------------------------------------------------------
# The fused whole-network kernel (one grid step == b_tile images folded in rows)
# ---------------------------------------------------------------------------
def _make_mcunet_kernel(h2, w2, h4, w4, b_tile, roll_sign):
    r2 = b_tile * h2 * w2
    r4 = b_tile * h4 * w4
    img4 = h4 * w4
    bf16, f32 = jnp.bfloat16, jnp.float32

    def relu6(v):
        return jnp.clip(v, 0.0, 6.0)

    def mm(a, w_bf16):   # MXU matmul: bf16 operands, f32 accumulation
        return jnp.dot(a.astype(bf16), w_bf16, preferred_element_type=f32)

    def dw_roll(x, w9, m9, wmap, nrows):
        """Stride-1 3x3 depthwise conv: taps via pltpu.roll (XLU) + masks (VPU)."""
        acc = None
        for dy in range(3):
            for dx in range(3):
                t = dy * 3 + dx
                delta = (dy - 1) * wmap + (dx - 1)
                if delta == 0:
                    tap = x
                elif roll_sign == 0:
                    tap = jnp.roll(x, shift=-delta, axis=0)
                else:
                    tap = pltpu.roll(x, shift=(roll_sign * delta) % nrows, axis=0)
                contrib = tap * w9[t] * m9[t]
                acc = contrib if acc is None else acc + contrib
        return acc

    def kernel(patches_ref, fw_ref, fb_ref,
               d0w_ref, d0b_ref, m2_ref, p0w_ref, p0b_ref,
               e1w_ref, e1b_ref, g1_ref, d1w_ref, d1b_ref, p1w_ref, p1b_ref,
               e2w_ref, e2b_ref, d2w_ref, d2b_ref, m4_ref, p2w_ref, p2b_ref,
               fmw_ref, fmb_ref, clw_ref, clb_ref,
               logits_ref, ft_ref):
        # first_conv 3x3 s2 p1: ONE MXU matmul over hoisted im2col patches.
        x0 = relu6(jnp.dot(patches_ref[...], fw_ref[...],
                           preferred_element_type=f32) + fb_ref[...])       # (r2, 16)

        # block 0 (expand=1): dw3x3 s1 (roll + mask) -> 1x1 project -> residual.
        d = relu6(dw_roll(x0, d0w_ref[...], m2_ref[...], w2, r2) + d0b_ref[...])
        x0 = mm(d, p0w_ref[...]) + p0b_ref[...] + x0                        # (r2, 16)

        # block 1: 1x1 expand -> dw3x3 s2 (one stacked-gather matmul) -> project.
        e = relu6(mm(x0, e1w_ref[...]) + e1b_ref[...])                      # (r2, 64)
        g = jnp.dot(g1_ref[...], e.astype(bf16),
                    preferred_element_type=f32)                             # (9*r4, 64)
        d1w = d1w_ref[...]
        d = None
        for t in range(9):
            c = g[t * r4:(t + 1) * r4, :] * d1w[t]
            d = c if d is None else d + c
        d = relu6(d + d1b_ref[...])                                         # (r4, 64)
        x1 = mm(d, p1w_ref[...]) + p1b_ref[...]                             # (r4, 24)

        # block 2: expand -> dw3x3 s1 (roll + mask) -> project -> residual.
        e = relu6(mm(x1, e2w_ref[...]) + e2b_ref[...])                      # (r4, 96)
        d = relu6(dw_roll(e, d2w_ref[...], m4_ref[...], w4, r4) + d2b_ref[...])
        x2 = mm(d, p2w_ref[...]) + p2b_ref[...] + x1                        # (r4, 24)

        # feature_mix 1x1 (padded to 128 lanes) -> per-image GAP -> classifier.
        y = relu6(mm(x2, fmw_ref[...]) + fmb_ref[...])                      # (r4, 128)
        ysc = y * (1.0 / img4)
        for b in range(b_tile):
            ft_ref[pl.ds(b, 1), :] = jnp.sum(ysc[b * img4:(b + 1) * img4, :],
                                             axis=0, keepdims=True)
        ft = ft_ref[...]                                                    # (b_tile, 128)
        logits_ref[...] = mm(ft, clw_ref[...]) + clb_ref[...]               # (b_tile, 128)

    return kernel


# ---------------------------------------------------------------------------
# Wrapper: layout plumbing + hoisted constants + a single pallas_call
# ---------------------------------------------------------------------------
@partial(jax.jit, static_argnums=(2, 3))
def _mcunet_forward_jit(x_nchw, p, num_steps, roll_sign):
    n, cin, h, w = x_nchw.shape
    assert n % num_steps == 0 and h % 4 == 0 and w % 4 == 0
    b_tile = n // num_steps
    h2, w2 = h // 2, w // 2
    h4, w4 = h2 // 2, w2 // 2
    r2, r4 = b_tile * h2 * w2, b_tile * h4 * w4
    bf16, f32 = jnp.bfloat16, jnp.float32

    n_feat = p["fm_w"].shape[1]
    n_cls = p["cls_w"].shape[1]
    assert n_feat <= _LANE and n_cls <= _LANE
    # TODO(synk): real MCUNet checkpoints store Conv2d weights as (O, I, kH, kW)
    # plus separate BatchNorm stats; transpose + fold them into these
    # (kH, kW, I, O) / (Cin, Cout) weights and biases when importing a checkpoint.

    # ---- input layout plumbing (once, in the wrapper): NCHW -> NHWC -> im2col ----
    x = jnp.transpose(x_nchw, (0, 2, 3, 1)).astype(f32)                # (n, h, w, cin)
    xp = jnp.pad(x, ((0, 0), (1, 1), (1, 1), (0, 0)))
    taps = [xp[:, dy:dy + h:2, dx:dx + w:2, :]
            for dy in range(3) for dx in range(3)]                     # 9 x (n,h2,w2,cin)
    patches = jnp.stack(taps, axis=3)                                  # (n,h2,w2,9,cin)
    patches = patches.reshape(num_steps, r2, 9 * cin).astype(bf16)

    # ---- hoisted constants (trace-time numpy) ----
    m2 = jnp.asarray(_dw_masks(h2, w2, b_tile))                        # (9, r2, 1) f32
    m4 = jnp.asarray(_dw_masks(h4, w4, b_tile))                        # (9, r4, 1) f32
    g1 = jnp.asarray(_stride2_dw_gather(h2, w2, b_tile), dtype=bf16)   # (9*r4, r2) bf16

    # ---- weight repacking ----
    def b_(v):    # bias (C,) -> (1, C) f32
        return v.reshape(1, -1).astype(f32)

    def dw_(v):   # depthwise (3, 3, C) -> (9, 1, C) f32, tap-major
        return v.reshape(9, 1, -1).astype(f32)

    fw = p["first_w"].reshape(9 * cin, -1).astype(bf16)                # (9*cin, 16)
    fm_w = jnp.pad(p["fm_w"].astype(bf16), ((0, 0), (0, _LANE - n_feat)))
    fm_b = jnp.pad(b_(p["fm_b"]), ((0, 0), (0, _LANE - n_feat)))
    cl_w = jnp.pad(p["cls_w"].astype(bf16),
                   ((0, _LANE - n_feat), (0, _LANE - n_cls)))
    cl_b = jnp.pad(b_(p["cls_b"]), ((0, 0), (0, _LANE - n_cls)))

    inputs, in_specs = [], []

    def add(a, spec=None):
        if spec is None:  # whole (small) array resident in VMEM, fetched once
            nd = a.ndim
            spec = pl.BlockSpec(a.shape, lambda i, _nd=nd: (0,) * _nd)
        inputs.append(a)
        in_specs.append(spec)

    add(patches, pl.BlockSpec((None, r2, 9 * cin), lambda i: (i, 0, 0)))
    add(fw); add(b_(p["first_b"]))
    add(dw_(p["b0_dw_w"])); add(b_(p["b0_dw_b"])); add(m2)
    add(p["b0_pw_w"].astype(bf16)); add(b_(p["b0_pw_b"]))
    add(p["b1_exp_w"].astype(bf16)); add(b_(p["b1_exp_b"]))
    add(g1); add(dw_(p["b1_dw_w"])); add(b_(p["b1_dw_b"]))
    add(p["b1_pw_w"].astype(bf16)); add(b_(p["b1_pw_b"]))
    add(p["b2_exp_w"].astype(bf16)); add(b_(p["b2_exp_b"]))
    add(dw_(p["b2_dw_w"])); add(b_(p["b2_dw_b"])); add(m4)
    add(p["b2_pw_w"].astype(bf16)); add(b_(p["b2_pw_b"]))
    add(fm_w); add(fm_b); add(cl_w); add(cl_b)

    out_shape = (jax.ShapeDtypeStruct((num_steps, b_tile, _LANE), f32),
                 jax.ShapeDtypeStruct((num_steps, b_tile, _LANE), f32))
    out_specs = (pl.BlockSpec((None, b_tile, _LANE), lambda i: (i, 0, 0)),
                 pl.BlockSpec((None, b_tile, _LANE), lambda i: (i, 0, 0)))

    macs = (r2 * (9 * cin) * 16 + r2 * 16 * 16 + r2 * 16 * 64
            + (9 * r4) * r2 * 64 + r4 * 64 * 24 + r4 * 24 * 96
            + r4 * 96 * 24 + r4 * 24 * _LANE + b_tile * _LANE * _LANE)
    bytes_accessed = int(sum(a.size * a.dtype.itemsize for a in inputs)
                         + 2 * num_steps * b_tile * _LANE * 4)

    logits_pad, ft_pad = pl.pallas_call(
        _make_mcunet_kernel(h2, w2, h4, w4, b_tile, roll_sign),
        out_shape=out_shape,
        grid=(num_steps,),
        in_specs=in_specs,
        out_specs=out_specs,
        compiler_params=pltpu.CompilerParams(
            dimension_semantics=("parallel",)),
        cost_estimate=pl.CostEstimate(flops=2 * macs * num_steps,
                                      transcendentals=0,
                                      bytes_accessed=bytes_accessed),
    )(*inputs)

    logits = logits_pad.reshape(n, _LANE)[:, :n_cls]
    ft = ft_pad.reshape(n, _LANE)[:, :n_feat]
    return logits, ft


def mcunet_forward(x_nchw, params, num_steps=None):
    n = x_nchw.shape[0]
    if num_steps is None:
        num_steps = _default_num_steps(n)
    if n % num_steps != 0:
        num_steps = 1
    return _mcunet_forward_jit(x_nchw, params, num_steps, _get_roll_sign())


# ---------------------------------------------------------------------------
# Pure-JAX reference (independent slicing-based convs; same bf16 matmul rounding)
# ---------------------------------------------------------------------------
def mcunet_reference(x_nchw, p):
    f32, bf16 = jnp.float32, jnp.bfloat16
    relu6 = lambda v: jnp.clip(v, 0.0, 6.0)

    def conv3x3(x, w, b, stride):                 # x NHWC, w (3,3,cin,cout)
        nn_, hh, ww, _ = x.shape
        ho, wo = (hh - 1) // stride + 1, (ww - 1) // stride + 1
        xp = jnp.pad(x, ((0, 0), (1, 1), (1, 1), (0, 0)))
        acc = jnp.zeros((nn_, ho, wo, w.shape[-1]), f32)
        for dy in range(3):
            for dx in range(3):
                tap = xp[:, dy:dy + stride * (ho - 1) + 1:stride,
                         dx:dx + stride * (wo - 1) + 1:stride, :]
                acc = acc + jnp.einsum('nhwc,co->nhwo', tap.astype(bf16),
                                       w[dy, dx].astype(bf16),
                                       preferred_element_type=f32)
        return acc + b

    def dwconv3x3(x, w, b, stride, round_input=False):   # w (3,3,C)
        if round_input:   # kernel gathers this input through a bf16 matmul
            x = x.astype(bf16).astype(f32)
        nn_, hh, ww, c = x.shape
        ho, wo = (hh - 1) // stride + 1, (ww - 1) // stride + 1
        xp = jnp.pad(x, ((0, 0), (1, 1), (1, 1), (0, 0)))
        acc = jnp.zeros((nn_, ho, wo, c), f32)
        for dy in range(3):
            for dx in range(3):
                tap = xp[:, dy:dy + stride * (ho - 1) + 1:stride,
                         dx:dx + stride * (wo - 1) + 1:stride, :]
                acc = acc + tap * w[dy, dx]
        return acc + b

    def dense(x, w, b):
        return jnp.einsum('nhwc,co->nhwo', x.astype(bf16), w.astype(bf16),
                          preferred_element_type=f32) + b

    x = jnp.transpose(x_nchw, (0, 2, 3, 1)).astype(f32)
    x = relu6(conv3x3(x, p["first_w"], p["first_b"], 2))
    d = relu6(dwconv3x3(x, p["b0_dw_w"], p["b0_dw_b"], 1))
    x = dense(d, p["b0_pw_w"], p["b0_pw_b"]) + x
    e = relu6(dense(x, p["b1_exp_w"], p["b1_exp_b"]))
    d = relu6(dwconv3x3(e, p["b1_dw_w"], p["b1_dw_b"], 2, round_input=True))
    x = dense(d, p["b1_pw_w"], p["b1_pw_b"])
    e = relu6(dense(x, p["b2_exp_w"], p["b2_exp_b"]))
    d = relu6(dwconv3x3(e, p["b2_dw_w"], p["b2_dw_b"], 1))
    x = dense(d, p["b2_pw_w"], p["b2_pw_b"]) + x
    y = relu6(dense(x, p["fm_w"], p["fm_b"]))
    ft = jnp.mean(y, axis=(1, 2))
    logits = jnp.dot(ft.astype(bf16), p["cls_w"].astype(bf16),
                     preferred_element_type=f32) + p["cls_b"]
    return logits, ft


# ---------------------------------------------------------------------------
# Deterministic parameter construction (BN assumed folded into weights/biases)
# ---------------------------------------------------------------------------
def build_params(key, cin=4, num_classes=10):
    def nxt():
        nonlocal key
        key, sub = jax.random.split(key)
        return sub

    def dense_w(ci, co):
        return jax.random.normal(nxt(), (ci, co), jnp.float32) / np.sqrt(ci)

    def bias(c):
        return jax.random.normal(nxt(), (c,), jnp.float32) * 0.01

    def conv_w(ci, co):
        return jax.random.normal(nxt(), (3, 3, ci, co), jnp.float32) / np.sqrt(9 * ci)

    def dw_w(c):
        return jax.random.normal(nxt(), (3, 3, c), jnp.float32) / 3.0

    p = {}
    p["first_w"], p["first_b"] = conv_w(cin, 16), bias(16)      # 3x3 s2, cin->16
    p["b0_dw_w"], p["b0_dw_b"] = dw_w(16), bias(16)             # block0: dw s1
    p["b0_pw_w"], p["b0_pw_b"] = dense_w(16, 16), bias(16)      #         project + res
    p["b1_exp_w"], p["b1_exp_b"] = dense_w(16, 64), bias(64)    # block1: expand
    p["b1_dw_w"], p["b1_dw_b"] = dw_w(64), bias(64)             #         dw s2
    p["b1_pw_w"], p["b1_pw_b"] = dense_w(64, 24), bias(24)      #         project
    p["b2_exp_w"], p["b2_exp_b"] = dense_w(24, 96), bias(96)    # block2: expand
    p["b2_dw_w"], p["b2_dw_b"] = dw_w(96), bias(96)             #         dw s1
    p["b2_pw_w"], p["b2_pw_b"] = dense_w(96, 24), bias(24)      #         project + res
    p["fm_w"], p["fm_b"] = dense_w(24, 32), bias(32)            # feature_mix 1x1
    p["cls_w"], p["cls_b"] = dense_w(32, num_classes), bias(num_classes)
    return p


# ---------------------------------------------------------------------------
if __name__ == "__main__":
    key = jax.random.PRNGKey(0)
    k_in, k_par = jax.random.split(key)

    # PyTorch-convention NCHW input
    x = jax.random.normal(k_in, (2, 4, 16, 16), jnp.float32)
    params = build_params(k_par, cin=4, num_classes=10)

    logits, ft = mcunet_forward(x, params)
    jax.block_until_ready(logits)
    jax.block_until_ready(ft)

    assert logits.shape == (2, 10), logits.shape
    assert ft.shape == (2, 32), ft.shape
    assert np.all(np.isfinite(np.asarray(logits)))
    assert np.all(np.isfinite(np.asarray(ft)))

    # Correctness check vs. an independent pure-JAX reference (same bf16 rounding).
    ref_logits, ref_ft = mcunet_reference(x, params)
    np.testing.assert_allclose(np.asarray(logits), np.asarray(ref_logits),
                               rtol=2e-2, atol=2e-2)
    np.testing.assert_allclose(np.asarray(ft), np.asarray(ref_ft),
                               rtol=2e-2, atol=2e-2)
    print("KERNEL_OK")
</pallas_src>

<mosaic_0001>
module attributes {stable_mosaic.version = 11 : i64} {
  func.func @_roll_probe_kernel(%arg0: memref<8x128xf32, #tpu.memory_space<vmem>>, %arg1: memref<8x128xf32, #tpu.memory_space<vmem>>) attributes {dimension_semantics = [], scalar_prefetch = 0 : i64, scratch_operands = 0 : i64, tpu.core_type = #tpu.core_type<tc>} {
    %c0 = arith.constant 0 : index
    %c0_0 = arith.constant 0 : index
    %0 = vector.load %arg0[%c0, %c0_0] : memref<8x128xf32, #tpu.memory_space<vmem>>, vector<8x128xf32>
    %c1_i32 = arith.constant 1 : i32
    %1 = tpu.dynamic_rotate %0 by %c1_i32 dim 0 : vector<8x128xf32>, i32 -> vector<8x128xf32>
    %c0_1 = arith.constant 0 : index
    %c0_2 = arith.constant 0 : index
    %2 = vector.load %arg1[%c0_1, %c0_2] : memref<8x128xf32, #tpu.memory_space<vmem>>, vector<8x128xf32>
    tpu.vector_store %arg1[%c0_1, %c0_2], %1 {strides = array<i32>} : memref<8x128xf32, #tpu.memory_space<vmem>>, vector<8x128xf32>,
    return
  }
}

</mosaic_0001>

<llo_original>
// kernel: tpu_custom_call.1
$region0: #{tpu_custom_call.1}
  #allocation0 [shape = 'u32[]', space=smem, size = 0x4, offset = 0x4, fixed_abs, tag = 'smem constant byte address 0x4 - core index']
  #allocation1 [shape = 'u32[144,128]{1,0:T(1,128)}', space=vmem, size = 0x12000, scoped, tag = 'internal scratch']
  %s0 = inlined_call_operand.hbm [shape: f32[8,128], index: 0, kind: input, shape index: {}]
  %s1 = inlined_call_operand.hbm [shape: f32[8,128], index: 1, kind: output, shape index: {}]
  %s2 = sld [smem:[#allocation0]]
  $region18: #{tpu_custom_call.1} parent=0
    _
  %s4 = ssub.s32 1, %s2
  %s5 = scalar_select 0, %s4, %s2
  $region1: #{tpu_custom_call.1} parent=0
    #allocation2 [shape = 'u8[4096]{0}', space=vmem, size = 0x1000, scoped, tag = 'input window, operand 0, single buffered']
    #allocation3 [shape = 's32[1]{0}', space=sflag, size = 0x4, scoped, tag = 'scoped memory for tpu_custom_call.1']
    #allocation4 [shape = 's32[1]{0}', space=sflag, size = 0x4, scoped, tag = 'scoped memory for tpu_custom_call.1']
    #allocation5 [shape = 'u8[4096]{0}', space=vmem, size = 0x1000, scoped, tag = 'output window, operand 0, single buffered']
    %6 = vsyncpa [#allocation3], 0
    %7 = vsyncpa [#allocation4], 0
    // Predicated region
    $region2: #{tpu_custom_call.1} parent=1 // pred_check
      _
    $region3: #{tpu_custom_call.1} parent=1 // pred_check_branch
      %9 = sbr.rel (0) target = $region5
    $region4: #{tpu_custom_call.1} parent=1 // pred_region
      %s11 = ssub.s32 128, 128
      %12 = vsyncadd [#allocation3], %s11
      %s14 = sshll.u32 [#allocation2], 4
      %s15 = int_to_ptr.vmem [resolvable:$true] %s14
      %17 = dma.hbm_to_vmem [thread:$0]  %s0, 128, %s15, [#allocation3]
    $region5: #{tpu_custom_call.1} parent=1 // pred_fallthru
      _
    // Predicated region
    $region6: #{tpu_custom_call.1} parent=1 // pred_check
      _
    $region7: #{tpu_custom_call.1} parent=1 // pred_check_branch
      %19 = sbr.rel (0) target = $region9
    $region8: #{tpu_custom_call.1} parent=1 // pred_region
      %20 = dma.done [#allocation3], 128
    $region9: #{tpu_custom_call.1} parent=1 // pred_fallthru
      _
    %v21 = vld [vmem:[#allocation2] sm:$0xff]
    %v22 = vrot.slane %v21, 7
    %23 = vst [vmem:[#allocation5] sm:$0xff] %v22
    // Predicated region
    $region10: #{tpu_custom_call.1} parent=1 // pred_check
      _
    $region11: #{tpu_custom_call.1} parent=1 // pred_check_branch
      %25 = sbr.rel (0) target = $region13
    $region12: #{tpu_custom_call.1} parent=1 // pred_region
      %s27 = ssub.s32 128, 128
      %28 = vsyncadd [#allocation4], %s27
      %s30 = sshll.u32 [#allocation5], 4
      %s31 = int_to_ptr.vmem [resolvable:$true] %s30
      %33 = dma.vmem_to_hbm [thread:$0]  %s31, 128, %s1, [#allocation4]
    $region13: #{tpu_custom_call.1} parent=1 // pred_fallthru
      _
    // Predicated region
    $region14: #{tpu_custom_call.1} parent=1 // pred_check
      _
    $region15: #{tpu_custom_call.1} parent=1 // pred_check_branch
      %35 = sbr.rel (0) target = $region17
    $region16: #{tpu_custom_call.1} parent=1 // pred_region
      %36 = dma.done [#allocation4], 128
    $region17: #{tpu_custom_call.1} parent=1 // pred_fallthru
      _
    %37 = vsyncpa [#allocation3], 1
    %38 = vsyncpa [#allocation4], 1

</llo_original>
